<compile_context>
chip_gen: v6e
topology: v6e:2x2x1
jax: 0.10.0
libtpu: 0.0.40
codegen_flags: <defaults>
</compile_context>

<pallas_src>
import functools

import jax
import jax.numpy as jnp
from jax.experimental import pallas as pl
from jax.experimental.pallas import tpu as pltpu

KERNEL_SIZES = (2, 3, 4)      # conv window heights of the three branches


def _round_up(x, m):
    return (x + m - 1) // m * m


def _vmem_capacity_bytes():
    """Physical VMEM per core; conservative 64 MiB (v7x size) fallback."""
    try:
        return int(pltpu.get_tpu_info().vmem_capacity_bytes)
    except Exception:
        return 64 * 1024 * 1024


def _pick_tiles(B, W, E, Kmax, C3, NLp, budget_bytes):
    """Pick (batch tile TB, time chunk Tc) whose working set fits the budget.

    Prefers the largest TB (amortizes resident weights & per-step overhead and
    maximizes MXU M), then the largest Tc. TB is capped so the batch grid has
    >= 2 steps when B > 8, so both TensorCores get grid steps on v7x.
    """
    KE = Kmax * E
    resident = KE * C3 * 2 + C3 * 4 + C3 * NLp * 2 + NLp * 4 + C3 * 4
    tb_max = min(256, _round_up(B, 8))
    if B > 8:
        tb_max = min(tb_max, max(8, _round_up((B + 1) // 2, 8)))
    w8 = _round_up(W, 8)
    for tb in range(tb_max, 7, -8):
        for tc in (128, 64, 32, 16, 8):
            tc = min(tc, w8)
            rc = tc + Kmax - 1
            need = (2 * rc * tb * E * 2          # emb chunk (double-buffered) bf16
                    + tc * tb * KE * 2           # im2col bf16
                    + 2 * tc * tb * C3 * 4       # conv / masked f32 temporaries
                    + tb * C3 * 4                # running-max scratch
                    + 2 * tb * NLp * 4           # output tile (double-buffered)
                    + resident)
            if need <= budget_bytes:
                return tb, tc
    return 8, 8


def textcnn_kernel(emb_ref, wconv_ref, bconv_ref, vlen_ref, wfc_ref, bfc_ref,
                   out_ref, pooled_ref, *, kmax):
    t = pl.program_id(1)

    @pl.when(t == 0)
    def _init():                      # running max; ReLU >= 0 so 0 is its identity
        pooled_ref[...] = jnp.zeros_like(pooled_ref)

    _, rc, tb, e = emb_ref.shape
    tc = rc - (kmax - 1)
    c3 = wconv_ref.shape[-1]

    # One fused conv matmul: im2col over the Kmax taps. The shifted slices are
    # along the leading (time) axis of the time-major chunk, so no sublane
    # relayout; contraction depth is K = Kmax*E instead of E.
    x = emb_ref[0]                                               # [rc, tb, e] bf16
    im2col = jnp.concatenate([x[i:i + tc] for i in range(kmax)], axis=-1)
    acc = jnp.dot(im2col.reshape(tc * tb, kmax * e), wconv_ref[...],
                  preferred_element_type=jnp.float32)            # [tc*tb, c3] f32
    z = (acc + bconv_ref[...]).reshape(tc, tb, c3)

    # Fused bias + ReLU + branch-validity mask in a single select, then the
    # running max over this time chunk.
    w_idx = t * tc + jax.lax.broadcasted_iota(jnp.int32, (tc, c3), 0)
    valid = (w_idx < vlen_ref[...])[:, None, :]                  # [tc, 1, c3]
    z = jnp.where(jnp.logical_and(valid, z > 0.0), z, 0.0)
    pooled_ref[...] = jnp.maximum(pooled_ref[...], z.max(axis=0))

    @pl.when(t == pl.num_programs(1) - 1)
    def _finalize():
        # TODO(synk): nn.Dropout is identity at inference; training-mode
        # stochastic masking is not implemented here.
        logits = jnp.dot(pooled_ref[...].astype(wfc_ref.dtype), wfc_ref[...],
                         preferred_element_type=jnp.float32)
        out_ref[...] = logits + bfc_ref[...]


def build_fused_params(params, c3, nlp, compute_dtype):
    """Pack conv/fc weights into lane-padded, branch-concatenated slabs."""
    E = params['embedding'].shape[1]
    C = params['b2'].shape[-1]
    NL = params['fc_b'].shape[-1]
    Kmax = max(KERNEL_SIZES)

    w_conv = jnp.zeros((Kmax, E, c3), jnp.float32)    # zero taps for k < Kmax
    b_conv = jnp.zeros((1, c3), jnp.float32)
    w_fc = jnp.zeros((c3, nlp), jnp.float32)          # zero rows for pad lanes
    b_fc = jnp.zeros((1, nlp), jnp.float32)
    for seg, k in enumerate(KERNEL_SIZES):
        lo = seg * C
        w_conv = w_conv.at[:k, :, lo:lo + C].set(params[f'w{k}'])
        b_conv = b_conv.at[:, lo:lo + C].set(params[f'b{k}'])
    w_fc = w_fc.at[:len(KERNEL_SIZES) * C, :NL].set(params['fc_w'])
    b_fc = b_fc.at[:, :NL].set(params['fc_b'])
    # im2col ordering is tap-major, embedding-minor -> flatten (Kmax, E) rows.
    w_conv = w_conv.reshape(Kmax * E, c3).astype(compute_dtype)
    return w_conv, b_conv, w_fc.astype(compute_dtype), b_fc


def textcnn_forward(token_ids, params, compute_dtype=jnp.bfloat16):
    B, L = token_ids.shape
    E = params['embedding'].shape[1]
    C = params['b2'].shape[-1]
    NL = params['fc_b'].shape[-1]
    Kmax = max(KERNEL_SIZES)
    assert L >= Kmax, "Conv2d (and this kernel) needs seq_len >= max kernel size"

    C3 = _round_up(len(KERNEL_SIZES) * C, 128)   # all branches share one lane slab
    NLp = _round_up(NL, 128)
    KE = Kmax * E
    W = L - min(KERNEL_SIZES) + 1                # number of time windows to scan

    vmem_cap = _vmem_capacity_bytes()
    TB, Tc = _pick_tiles(B, W, E, Kmax, C3, NLp, budget_bytes=int(0.45 * vmem_cap))
    NT = -(-W // Tc)                             # time chunks = 2nd ("arbitrary") grid axis
    Rc = Tc + Kmax - 1                           # chunk rows incl. conv halo
    B_pad = _round_up(B, TB)
    L_need = NT * Tc + Kmax - 1

    w_conv, b_conv, w_fc, b_fc = build_fused_params(params, C3, NLp, compute_dtype)

    # Per-lane valid-window count (branch k owns lanes [seg*C, (seg+1)*C); pad
    # lanes stay 0 so they are always masked).
    vlen = jnp.zeros((1, C3), jnp.int32)
    for seg, k in enumerate(KERNEL_SIZES):
        vlen = vlen.at[:, seg * C:(seg + 1) * C].set(L - k + 1)

    # Time-major, halo-duplicated token gather -> one HBM write of the bf16
    # activation in the exact layout the kernel streams. Pad token id 0 is fine
    # because padded windows are masked to zero inside the kernel.
    tok = jnp.pad(token_ids.astype(jnp.int32), ((0, B_pad - B), (0, L_need - L)))
    time_idx = (jnp.arange(NT) * Tc)[:, None] + jnp.arange(Rc)[None, :]
    tok_chunks = jnp.transpose(tok[:, time_idx], (1, 2, 0))        # [NT, Rc, B_pad]
    emb_chunks = jnp.take(params['embedding'].astype(compute_dtype),
                          tok_chunks, axis=0)                      # [NT, Rc, B_pad, E]
    # TODO(synk): fusing the embedding gather into the kernel (table in HBM via
    # memory_space=pl.ANY + scalar-prefetched token ids) would remove one HBM
    # round-trip of this activation; kept in plain JAX here.

    grid = (B_pad // TB, NT)
    flops = 2 * B_pad * NT * Tc * KE * C3 + 2 * B_pad * C3 * NLp
    bytes_accessed = int(sum(a.size * a.dtype.itemsize
                             for a in (emb_chunks, w_conv, b_conv, vlen, w_fc, b_fc))
                         + B_pad * NLp * 4)

    out = pl.pallas_call(
        functools.partial(textcnn_kernel, kmax=Kmax),
        out_shape=jax.ShapeDtypeStruct((B_pad, NLp), jnp.float32),
        grid_spec=pltpu.PrefetchScalarGridSpec(
            num_scalar_prefetch=0,
            grid=grid,
            in_specs=[
                pl.BlockSpec((1, Rc, TB, E), lambda b, t: (t, 0, b, 0)),  # emb chunk
                pl.BlockSpec((KE, C3), lambda b, t: (0, 0)),      # conv weights (resident)
                pl.BlockSpec((1, C3), lambda b, t: (0, 0)),       # conv bias
                pl.BlockSpec((1, C3), lambda b, t: (0, 0)),       # per-lane valid length
                pl.BlockSpec((C3, NLp), lambda b, t: (0, 0)),     # fc weights
                pl.BlockSpec((1, NLp), lambda b, t: (0, 0)),      # fc bias
            ],
            out_specs=pl.BlockSpec((TB, NLp), lambda b, t: (b, 0)),
            scratch_shapes=[pltpu.VMEM((TB, C3), jnp.float32)],   # running time-max
        ),
        compiler_params=pltpu.CompilerParams(
            dimension_semantics=("parallel", "arbitrary"),        # batch across TCs; time streamed
            vmem_limit_bytes=int(0.70 * vmem_cap),
        ),
        cost_estimate=pl.CostEstimate(flops=flops, transcendentals=0,
                                      bytes_accessed=bytes_accessed),
    )(emb_chunks, w_conv, b_conv, vlen, w_fc, b_fc)

    return out[:B, :NL]                                           # drop batch/label padding


def init_params(key, vocab, embed_dim, cnn_kernel_size, num_labels):
    ks = jax.random.split(key, 9)
    s = 0.1
    p = {
        'embedding': jax.random.normal(ks[0], (vocab, embed_dim), jnp.float32) * s,
        'fc_w': jax.random.normal(ks[1], (3 * cnn_kernel_size, num_labels),
                                  jnp.float32) * s,
        'fc_b': jax.random.normal(ks[2], (1, num_labels), jnp.float32) * s,
    }
    for idx, k in enumerate(KERNEL_SIZES):
        p[f'w{k}'] = jax.random.normal(ks[3 + idx],
                                       (k, embed_dim, cnn_kernel_size),
                                       jnp.float32) * s
        p[f'b{k}'] = jax.random.normal(ks[6 + idx],
                                       (1, cnn_kernel_size), jnp.float32) * s
    return p


def reference_forward(token_ids, p, compute_dtype=jnp.bfloat16):
    # Pure-JAX reference mirroring the PyTorch eval-mode forward; MXU operands
    # use the same bf16-in / f32-accumulate arithmetic as the kernel.
    emb = jnp.take(p['embedding'], token_ids, axis=0).astype(compute_dtype)
    B, L, E = emb.shape
    feats = []
    for k in KERNEL_SIZES:
        T = L - k + 1
        w = p[f'w{k}'].astype(compute_dtype)
        conv = sum(jnp.einsum('bte,ec->btc', emb[:, i:i + T, :], w[i],
                              preferred_element_type=jnp.float32)
                   for i in range(k))
        conv = conv + p[f'b{k}'][None, :, :]
        feats.append(jnp.max(jax.nn.relu(conv), axis=1))
    feat = jnp.concatenate(feats, axis=-1)               # [B, 3C] f32
    logits = jnp.dot(feat.astype(compute_dtype), p['fc_w'].astype(compute_dtype),
                     preferred_element_type=jnp.float32)
    return logits + p['fc_b']


if __name__ == "__main__":
    # small, forward-consistent shapes
    batch = 2
    seq_len = 8
    vocab = 32
    embedding_dim = 16
    cnn_kernel_size = 4      # conv output channels per branch (args.cnn_kernel_size)
    num_labels = 3

    key = jax.random.PRNGKey(0)
    pkey, xkey = jax.random.split(key)
    params = init_params(pkey, vocab, embedding_dim, cnn_kernel_size, num_labels)
    token_ids = jax.random.randint(xkey, (batch, seq_len), 0, vocab,
                                   dtype=jnp.int32)

    logits = textcnn_forward(token_ids, params)
    logits = jax.block_until_ready(logits)

    ref = reference_forward(token_ids, params)
    assert logits.shape == (batch, num_labels)
    assert jnp.allclose(logits, ref, atol=1e-3, rtol=1e-3), (logits, ref)

    print("KERNEL_OK")
</pallas_src>

<mosaic_0001>
module attributes {stable_mosaic.version = 11 : i64} {
  func.func @textcnn_kernel(%arg0: i32, %arg1: i32, %arg2: memref<1x11x8x16xbf16, #tpu.memory_space<vmem>>, %arg3: memref<64x128xbf16, #tpu.memory_space<vmem>>, %arg4: memref<1x128xf32, #tpu.memory_space<vmem>>, %arg5: memref<1x128xi32, #tpu.memory_space<vmem>>, %arg6: memref<128x128xbf16, #tpu.memory_space<vmem>>, %arg7: memref<1x128xf32, #tpu.memory_space<vmem>>, %arg8: memref<8x128xf32, #tpu.memory_space<vmem>>, %arg9: memref<8x128xf32, #tpu.memory_space<vmem>>) attributes {dimension_semantics = [#tpu.dimension_semantics<parallel>, #tpu.dimension_semantics<arbitrary>], iteration_bounds = array<i64: 1, 1>, scalar_prefetch = 0 : i64, scratch_operands = 1 : i64, tpu.core_type = #tpu.core_type<tc>, window_params = [{transform_indices = @transform_0, window_bounds = array<i64: 1, 11, 8, 16>}, {pipeline_mode = #tpu.pipeline_mode<synchronous>, transform_indices = @transform_1, window_bounds = array<i64: 64, 128>}, {pipeline_mode = #tpu.pipeline_mode<synchronous>, transform_indices = @transform_2, window_bounds = array<i64: 1, 128>}, {pipeline_mode = #tpu.pipeline_mode<synchronous>, transform_indices = @transform_3, window_bounds = array<i64: 1, 128>}, {pipeline_mode = #tpu.pipeline_mode<synchronous>, transform_indices = @transform_4, window_bounds = array<i64: 128, 128>}, {pipeline_mode = #tpu.pipeline_mode<synchronous>, transform_indices = @transform_5, window_bounds = array<i64: 1, 128>}, {transform_indices = @transform_6, window_bounds = array<i64: 8, 128>}]} {
    %c0_i32 = arith.constant 0 : i32
    %0 = arith.cmpi eq, %arg1, %c0_i32 : i32
    %1 = arith.extui %0 : i1 to i32
    %c0_i32_0 = arith.constant 0 : i32
    %2 = arith.cmpi ne, %1, %c0_i32_0 : i32
    scf.if %2 {
      %cst_19 = arith.constant 0.000000e+00 : f32
      %38 = vector.broadcast %cst_19 : f32 to vector<8x128xf32>
      %c0_20 = arith.constant 0 : index
      %c0_21 = arith.constant 0 : index
      %39 = vector.load %arg9[%c0_20, %c0_21] : memref<8x128xf32, #tpu.memory_space<vmem>>, vector<8x128xf32>
      tpu.vector_store %arg9[%c0_20, %c0_21], %38 {strides = array<i32>} : memref<8x128xf32, #tpu.memory_space<vmem>>, vector<8x128xf32>,
    } else {
    }
    %c0 = arith.constant 0 : index
    %c0_1 = arith.constant 0 : index
    %c0_2 = arith.constant 0 : index
    %c0_3 = arith.constant 0 : index
    %3 = vector.load %arg2[%c0, %c0_1, %c0_2, %c0_3] : memref<1x11x8x16xbf16, #tpu.memory_space<vmem>>, vector<1x11x8x16xbf16>
    %4 = vector.shape_cast %3 : vector<1x11x8x16xbf16> to vector<11x8x16xbf16>
    %5 = vector.extract_strided_slice %4 {offsets = [0, 0, 0], sizes = [8, 8, 16], strides = [1, 1, 1]} : vector<11x8x16xbf16> to vector<8x8x16xbf16>
    %6 = vector.extract_strided_slice %4 {offsets = [1, 0, 0], sizes = [8, 8, 16], strides = [1, 1, 1]} : vector<11x8x16xbf16> to vector<8x8x16xbf16>
    %7 = vector.extract_strided_slice %4 {offsets = [2, 0, 0], sizes = [8, 8, 16], strides = [1, 1, 1]} : vector<11x8x16xbf16> to vector<8x8x16xbf16>
    %8 = vector.extract_strided_slice %4 {offsets = [3, 0, 0], sizes = [8, 8, 16], strides = [1, 1, 1]} : vector<11x8x16xbf16> to vector<8x8x16xbf16>
    %9 = tpu.concatenate %5, %6, %7, %8 in 2 : vector<8x8x16xbf16>, vector<8x8x16xbf16>, vector<8x8x16xbf16>, vector<8x8x16xbf16> -> vector<8x8x64xbf16>
    %10 = vector.shape_cast %9 : vector<8x8x64xbf16> to vector<64x64xbf16>
    %c0_4 = arith.constant 0 : index
    %c0_5 = arith.constant 0 : index
    %11 = vector.load %arg3[%c0_4, %c0_5] : memref<64x128xbf16, #tpu.memory_space<vmem>>, vector<64x128xbf16>
    %cst = arith.constant dense<0.000000e+00> : vector<64x128xf32>
    %12 = tpu.matmul %10, %11, %cst {dimension_numbers = #tpu.dot_dimension_numbers<[1], [0], [0], [1], [0, 0, 1, 1], [], []>} : vector<64x64xbf16>, vector<64x128xbf16>, vector<64x128xf32> -> vector<64x128xf32>
    %c0_6 = arith.constant 0 : index
    %c0_7 = arith.constant 0 : index
    %13 = vector.load %arg4[%c0_6, %c0_7] : memref<1x128xf32, #tpu.memory_space<vmem>>, vector<1x128xf32>
    %14 = vector.broadcast %13 : vector<1x128xf32> to vector<64x128xf32>
    %15 = arith.addf %12, %14 : vector<64x128xf32>
    %16 = vector.shape_cast %15 : vector<64x128xf32> to vector<8x8x128xf32>
    %c8_i32 = arith.constant 8 : i32
    %17 = arith.muli %arg1, %c8_i32 : i32
    %18 = tpu.iota {dimensions = array<i32: 0>} : vector<8x128xi32>
    %19 = vector.broadcast %17 : i32 to vector<8x128xi32>
    %20 = arith.addi %19, %18 : vector<8x128xi32>
    %c0_8 = arith.constant 0 : index
    %c0_9 = arith.constant 0 : index
    %21 = vector.load %arg5[%c0_8, %c0_9] : memref<1x128xi32, #tpu.memory_space<vmem>>, vector<1x128xi32>
    %22 = vector.broadcast %21 : vector<1x128xi32> to vector<8x128xi32>
    %23 = arith.cmpi slt, %20, %22 : vector<8x128xi32>
    %24 = vector.shape_cast %23 : vector<8x128xi1> to vector<8x1x128xi1>
    %cst_10 = arith.constant 0.000000e+00 : f32
    %25 = vector.broadcast %cst_10 : f32 to vector<8x8x128xf32>
    %26 = arith.cmpf ogt, %16, %25 : vector<8x8x128xf32>
    %27 = vector.broadcast %24 : vector<8x1x128xi1> to vector<8x8x128xi1>
    %28 = arith.andi %27, %26 : vector<8x8x128xi1>
    %cst_11 = arith.constant 0.000000e+00 : f32
    %29 = vector.broadcast %cst_11 : f32 to vector<8x8x128xf32>
    %30 = arith.select %28, %16, %29 : vector<8x8x128xi1>, vector<8x8x128xf32>
    %c0_12 = arith.constant 0 : index
    %c0_13 = arith.constant 0 : index
    %31 = vector.load %arg9[%c0_12, %c0_13] : memref<8x128xf32, #tpu.memory_space<vmem>>, vector<8x128xf32>
    %cst_14 = arith.constant dense<0xFF800000> : vector<8x128xf32>
    %32 = vector.multi_reduction <maximumf>, %30, %cst_14 [0] : vector<8x8x128xf32> to vector<8x128xf32>
    %33 = arith.maximumf %31, %32 : vector<8x128xf32>
    %c0_15 = arith.constant 0 : index
    %c0_16 = arith.constant 0 : index
    %34 = vector.load %arg9[%c0_15, %c0_16] : memref<8x128xf32, #tpu.memory_space<vmem>>, vector<8x128xf32>
    tpu.vector_store %arg9[%c0_15, %c0_16], %33 {strides = array<i32>} : memref<8x128xf32, #tpu.memory_space<vmem>>, vector<8x128xf32>,
    %c0_i32_17 = arith.constant 0 : i32
    %35 = arith.cmpi eq, %arg1, %c0_i32_17 : i32
    %36 = arith.extui %35 : i1 to i32
    %c0_i32_18 = arith.constant 0 : i32
    %37 = arith.cmpi ne, %36, %c0_i32_18 : i32
    scf.if %37 {
      %c0_19 = arith.constant 0 : index
      %c0_20 = arith.constant 0 : index
      %38 = vector.load %arg9[%c0_19, %c0_20] : memref<8x128xf32, #tpu.memory_space<vmem>>, vector<8x128xf32>
      %39 = arith.truncf %38 : vector<8x128xf32> to vector<8x128xbf16>
      %c0_21 = arith.constant 0 : index
      %c0_22 = arith.constant 0 : index
      %40 = vector.load %arg6[%c0_21, %c0_22] : memref<128x128xbf16, #tpu.memory_space<vmem>>, vector<128x128xbf16>
      %cst_23 = arith.constant dense<0.000000e+00> : vector<8x128xf32>
      %41 = tpu.matmul %39, %40, %cst_23 {dimension_numbers = #tpu.dot_dimension_numbers<[1], [0], [0], [1], [0, 0, 1, 1], [], []>} : vector<8x128xbf16>, vector<128x128xbf16>, vector<8x128xf32> -> vector<8x128xf32>
      %c0_24 = arith.constant 0 : index
      %c0_25 = arith.constant 0 : index
      %42 = vector.load %arg7[%c0_24, %c0_25] : memref<1x128xf32, #tpu.memory_space<vmem>>, vector<1x128xf32>
      %43 = vector.broadcast %42 : vector<1x128xf32> to vector<8x128xf32>
      %44 = arith.addf %41, %43 : vector<8x128xf32>
      %c0_26 = arith.constant 0 : index
      %c0_27 = arith.constant 0 : index
      %45 = vector.load %arg8[%c0_26, %c0_27] : memref<8x128xf32, #tpu.memory_space<vmem>>, vector<8x128xf32>
      tpu.vector_store %arg8[%c0_26, %c0_27], %44 {strides = array<i32>} : memref<8x128xf32, #tpu.memory_space<vmem>>, vector<8x128xf32>,
    } else {
    }
    return
  }
  func.func @transform_0(%arg0: i32, %arg1: i32) -> (i32, i32, i32, i32) {
    %c0_i32 = arith.constant 0 : i32
    %c0_i32_0 = arith.constant 0 : i32
    %c0_i32_1 = arith.constant 0 : i32
    return %arg1, %c0_i32, %arg0, %c0_i32_0 : i32, i32, i32, i32
  }
  func.func @transform_1(%arg0: i32, %arg1: i32) -> (i32, i32) {
    %c0_i32 = arith.constant 0 : i32
    %c0_i32_0 = arith.constant 0 : i32
    %c0_i32_1 = arith.constant 0 : i32
    return %c0_i32, %c0_i32_0 : i32, i32
  }
  func.func @transform_2(%arg0: i32, %arg1: i32) -> (i32, i32) {
    %c0_i32 = arith.constant 0 : i32
    %c0_i32_0 = arith.constant 0 : i32
    %c0_i32_1 = arith.constant 0 : i32
    return %c0_i32, %c0_i32_0 : i32, i32
  }
  func.func @transform_3(%arg0: i32, %arg1: i32) -> (i32, i32) {
    %c0_i32 = arith.constant 0 : i32
    %c0_i32_0 = arith.constant 0 : i32
    %c0_i32_1 = arith.constant 0 : i32
    return %c0_i32, %c0_i32_0 : i32, i32
  }
  func.func @transform_4(%arg0: i32, %arg1: i32) -> (i32, i32) {
    %c0_i32 = arith.constant 0 : i32
    %c0_i32_0 = arith.constant 0 : i32
    %c0_i32_1 = arith.constant 0 : i32
    return %c0_i32, %c0_i32_0 : i32, i32
  }
  func.func @transform_5(%arg0: i32, %arg1: i32) -> (i32, i32) {
    %c0_i32 = arith.constant 0 : i32
    %c0_i32_0 = arith.constant 0 : i32
    %c0_i32_1 = arith.constant 0 : i32
    return %c0_i32, %c0_i32_0 : i32, i32
  }
  func.func @transform_6(%arg0: i32, %arg1: i32) -> (i32, i32) {
    %c0_i32 = arith.constant 0 : i32
    %c0_i32_0 = arith.constant 0 : i32
    return %arg0, %c0_i32 : i32, i32
  }
}

</mosaic_0001>

<llo_original>
// kernel: tpu_custom_call.1
$region0: #{tpu_custom_call.1}
  #allocation0 [shape = 'u32[]', space=smem, size = 0x4, offset = 0x4, fixed_abs, tag = 'smem constant byte address 0x4 - core index']
  #allocation1 [shape = 'u32[144,128]{1,0:T(1,128)}', space=vmem, size = 0x12000, scoped, tag = 'internal scratch']
  #allocation2 [shape = 'f32[8,128]{1,0:T(8,128)}', space=vmem, size = 0x1000, scoped, tag = 'scratch operand']
  %s0 = inlined_call_operand.hbm [shape: bf16[1,11,8,16], index: 0, kind: input, shape index: {}]
  %s1 = inlined_call_operand.hbm [shape: bf16[64,128], index: 1, kind: input, shape index: {}]
  %s2 = inlined_call_operand.vmem [shape: f32[1,128], index: 2, kind: input, shape index: {}]
  %s3 = inlined_call_operand.vmem [shape: s32[1,128], index: 3, kind: input, shape index: {}]
  %s4 = inlined_call_operand.hbm [shape: bf16[128,128], index: 4, kind: input, shape index: {}]
  %s5 = inlined_call_operand.vmem [shape: f32[1,128], index: 5, kind: input, shape index: {}]
  %s6 = inlined_call_operand.hbm [shape: f32[8,128], index: 6, kind: output, shape index: {}]
  %s7 = sld [smem:[#allocation0]]
  $region54: #{tpu_custom_call.1} parent=0
    _
  %s9 = ssub.s32 1, %s7
  %s10 = scalar_select 0, %s9, %s7
  $region1: #{tpu_custom_call.1} parent=0
    #allocation3 [shape = 'u8[22528]{0}', space=vmem, size = 0x5800, scoped, tag = 'input window, operand 0, single buffered']
    #allocation4 [shape = 's32[1]{0}', space=sflag, size = 0x4, scoped, tag = 'scoped memory for tpu_custom_call.1']
    #allocation5 [shape = 's32[1]{0}', space=sflag, size = 0x4, scoped, tag = 'scoped memory for tpu_custom_call.1']
    #allocation6 [shape = 'u8[16384]{0}', space=vmem, size = 0x4000, scoped, tag = 'input window, operand 1, single buffered']
    #allocation7 [shape = 's32[1]{0}', space=sflag, size = 0x4, scoped, tag = 'scoped memory for tpu_custom_call.1']
    #allocation8 [shape = 'u8[32768]{0}', space=vmem, size = 0x8000, scoped, tag = 'input window, operand 4, single buffered']
    #allocation9 [shape = 'u8[4096]{0}', space=vmem, size = 0x1000, scoped, tag = 'output window, operand 0, single buffered']
    %11 = vsyncpa [#allocation4], 0
    %12 = vsyncpa [#allocation7], 0
    %13 = vsyncpa [#allocation5], 0
    // Predicated region
    $region2: #{tpu_custom_call.1} parent=1 // pred_check
      _
    $region3: #{tpu_custom_call.1} parent=1 // pred_check_branch
      %15 = sbr.rel (0) target = $region5
    $region4: #{tpu_custom_call.1} parent=1 // pred_region
      %s17 = ssub.s32 704, 704
      %18 = vsyncadd [#allocation4], %s17
      %s19 = sshll.u32 [#allocation3], 4
      %s20 = int_to_ptr.vmem [resolvable:$true] %s19
      %25 = dma.hbm_to_vmem [thread:$0]  %s0, 704, %s20, [#allocation4], 64, 64, 4
    $region5: #{tpu_custom_call.1} parent=1 // pred_fallthru
      _
    // Predicated region
    $region6: #{tpu_custom_call.1} parent=1 // pred_check
      _
    $region7: #{tpu_custom_call.1} parent=1 // pred_check_branch
      %27 = sbr.rel (0) target = $region9
    $region8: #{tpu_custom_call.1} parent=1 // pred_region
      %s29 = ssub.s32 512, 512
      %30 = vsyncadd [#allocation7], %s29
      %s31 = sshll.u32 [#allocation6], 4
      %s32 = int_to_ptr.vmem [resolvable:$true] %s31
      %37 = dma.hbm_to_vmem [thread:$0]  %s1, 512, %s32, [#allocation7], 64, 64, 4
    $region9: #{tpu_custom_call.1} parent=1 // pred_fallthru
      _
    // Predicated region
    $region10: #{tpu_custom_call.1} parent=1 // pred_check
      _
    $region11: #{tpu_custom_call.1} parent=1 // pred_check_branch
      %39 = sbr.rel (0) target = $region13
    $region12: #{tpu_custom_call.1} parent=1 // pred_region
      _
    $region13: #{tpu_custom_call.1} parent=1 // pred_fallthru
      _
    // Predicated region
    $region14: #{tpu_custom_call.1} parent=1 // pred_check
      _
    $region15: #{tpu_custom_call.1} parent=1 // pred_check_branch
      %41 = sbr.rel (0) target = $region17
    $region16: #{tpu_custom_call.1} parent=1 // pred_region
      _
    $region17: #{tpu_custom_call.1} parent=1 // pred_fallthru
      _
    // Predicated region
    $region18: #{tpu_custom_call.1} parent=1 // pred_check
      _
    $region19: #{tpu_custom_call.1} parent=1 // pred_check_branch
      %43 = sbr.rel (0) target = $region21
    $region20: #{tpu_custom_call.1} parent=1 // pred_region
      %s45 = ssub.s32 1024, 1024
      %46 = vsyncadd [#allocation7], %s45
      %s47 = sshll.u32 [#allocation8], 4
      %s48 = int_to_ptr.vmem [resolvable:$true] %s47
      %53 = dma.hbm_to_vmem [thread:$0]  %s4, 1024, %s48, [#allocation7], 64, 64, 4
    $region21: #{tpu_custom_call.1} parent=1 // pred_fallthru
      _
    // Predicated region
    $region22: #{tpu_custom_call.1} parent=1 // pred_check
      _
    $region23: #{tpu_custom_call.1} parent=1 // pred_check_branch
      %55 = sbr.rel (0) target = $region25
    $region24: #{tpu_custom_call.1} parent=1 // pred_region
      _
    $region25: #{tpu_custom_call.1} parent=1 // pred_fallthru
      _
    // Predicated region
    $region26: #{tpu_custom_call.1} parent=1 // pred_check
      _
    $region27: #{tpu_custom_call.1} parent=1 // pred_check_branch
      %57 = sbr.rel (0) target = $region29
    $region28: #{tpu_custom_call.1} parent=1 // pred_region
      %58 = dma.done [#allocation4], 704
    $region29: #{tpu_custom_call.1} parent=1 // pred_fallthru
      _
    // Predicated region
    $region30: #{tpu_custom_call.1} parent=1 // pred_check
      _
    $region31: #{tpu_custom_call.1} parent=1 // pred_check_branch
      %60 = sbr.rel (0) target = $region33
    $region32: #{tpu_custom_call.1} parent=1 // pred_region
      %61 = dma.done [#allocation7], 512
    $region33: #{tpu_custom_call.1} parent=1 // pred_fallthru
      _
    // Predicated region
    $region34: #{tpu_custom_call.1} parent=1 // pred_check
      _
    $region35: #{tpu_custom_call.1} parent=1 // pred_check_branch
      %63 = sbr.rel (0) target = $region37
    $region36: #{tpu_custom_call.1} parent=1 // pred_region
      %64 = dma.done [#allocation7], 1024
    $region37: #{tpu_custom_call.1} parent=1 // pred_fallthru
      _
    %p66 = scmp.eq.s32.totalorder 0, 0
    // Predicated region
    $region38: #{tpu_custom_call.1} parent=1 // pred_check
      %p67 = pneg %p66
    $region39: #{tpu_custom_call.1} parent=1 // pred_check_branch
      %69 = sbr.rel (%p67) target = $region41
    $region40: #{tpu_custom_call.1} parent=1 // pred_region
      %70 = vst [vmem:[#allocation2] sm:$0xff] 0.0
    $region41: #{tpu_custom_call.1} parent=1 // pred_fallthru
      _
    %v71 = vld [vmem:[#allocation3] sm:$0xf]
    %v72 = vld [vmem:[#allocation3 + $0x4] sm:$0xf]
    %v73 = vld [vmem:[#allocation3 + $0x8] sm:$0xf]
    %v74 = vld [vmem:[#allocation3 + $0xc] sm:$0xf]
    %v75 = vld [vmem:[#allocation3 + $0x10] sm:$0xf]
    %v76 = vld [vmem:[#allocation3 + $0x14] sm:$0xf]
    %v77 = vld [vmem:[#allocation3 + $0x18] sm:$0xf]
    %v78 = vld [vmem:[#allocation3 + $0x1c] sm:$0xf]
    %v79 = vld [vmem:[#allocation3 + $0x20] sm:$0xf]
    %v80 = vld [vmem:[#allocation3 + $0x24] sm:$0xf]
    %v81 = vld [vmem:[#allocation3 + $0x28] sm:$0xf]
    %v90 = vunpack.c.l.b16 %v72
    %v91 = vunpack.c.l.b16 %v73
    %v92 = vunpack.c.l.b16 %v74
    %v93 = vunpack.c.l.b16 %v75
    %v94 = vunpack.c.l.b16 %v76
    %v95 = vunpack.c.l.b16 %v77
    %v96 = vunpack.c.l.b16 %v78
    %v97 = vunpack.c.l.b16 %v79
    %v98 = vpack.c.b16 %v90, %v90
    %v99 = vpack.c.b16 %v91, %v91
    %v100 = vpack.c.b16 %v92, %v92
    %v101 = vpack.c.b16 %v93, %v93
    %v102 = vpack.c.b16 %v94, %v94
    %v103 = vpack.c.b16 %v95, %v95
    %v104 = vpack.c.b16 %v96, %v96
    %v105 = vpack.c.b16 %v97, %v97
    %106 = vrot.lane.b32.xlu0 %v98, 16
    %v107 = vpop.permute.xlu0 %106
    %108 = vrot.lane.b32.xlu0 %v99, 16
    %v109 = vpop.permute.xlu0 %108
    %110 = vrot.lane.b32.xlu0 %v100, 16
    %v111 = vpop.permute.xlu0 %110
    %112 = vrot.lane.b32.xlu0 %v101, 16
    %v113 = vpop.permute.xlu0 %112
    %114 = vrot.lane.b32.xlu0 %v102, 16
    %v115 = vpop.permute.xlu0 %114
    %116 = vrot.lane.b32.xlu0 %v103, 16
    %v117 = vpop.permute.xlu0 %116
    %118 = vrot.lane.b32.xlu0 %v104, 16
    %v119 = vpop.permute.xlu0 %118
    %120 = vrot.lane.b32.xlu0 %v105, 16
    %v121 = vpop.permute.xlu0 %120
    %v123 = vunpack.c.l.b16 %v80
    %v124 = vpack.c.b16 %v123, %v123
    %125 = vrot.lane.b32.xlu0 %v99, 32
    %v126 = vpop.permute.xlu0 %125
    %127 = vrot.lane.b32.xlu0 %v100, 32
    %v128 = vpop.permute.xlu0 %127
    %129 = vrot.lane.b32.xlu0 %v101, 32
    %v130 = vpop.permute.xlu0 %129
    %131 = vrot.lane.b32.xlu0 %v102, 32
    %v132 = vpop.permute.xlu0 %131
    %133 = vrot.lane.b32.xlu0 %v103, 32
    %v134 = vpop.permute.xlu0 %133
    %135 = vrot.lane.b32.xlu0 %v104, 32
    %v136 = vpop.permute.xlu0 %135
    %137 = vrot.lane.b32.xlu0 %v105, 32
    %v138 = vpop.permute.xlu0 %137
    %139 = vrot.lane.b32.xlu0 %v124, 32
    %v140 = vpop.permute.xlu0 %139
    %v142 = vunpack.c.l.b16 %v81
    %v143 = vpack.c.b16 %v142, %v142
    %144 = vrot.lane.b32.xlu0 %v100, 48
    %v145 = vpop.permute.xlu0 %144
    %146 = vrot.lane.b32.xlu0 %v101, 48
    %v147 = vpop.permute.xlu0 %146
    %148 = vrot.lane.b32.xlu0 %v102, 48
    %v149 = vpop.permute.xlu0 %148
    %150 = vrot.lane.b32.xlu0 %v103, 48
    %v151 = vpop.permute.xlu0 %150
    %152 = vrot.lane.b32.xlu0 %v104, 48
    %v153 = vpop.permute.xlu0 %152
    %154 = vrot.lane.b32.xlu0 %v105, 48
    %v155 = vpop.permute.xlu0 %154
    %156 = vrot.lane.b32.xlu0 %v124, 48
    %v157 = vpop.permute.xlu0 %156
    %158 = vrot.lane.b32.xlu0 %v143, 48
    %v159 = vpop.permute.xlu0 %158
    %vm160 = vcmask 130048
    %v163 = vsel %vm160, %v71, %v107
    %v166 = vsel %vm160, %v72, %v109
    %v169 = vsel %vm160, %v73, %v111
    %v172 = vsel %vm160, %v74, %v113
    %v175 = vsel %vm160, %v75, %v115
    %v178 = vsel %vm160, %v76, %v117
    %v181 = vsel %vm160, %v77, %v119
    %v184 = vsel %vm160, %v78, %v121
    %vm185 = vcmask 261120
    %v187 = vsel %vm185, %v163, %v126
    %v189 = vsel %vm185, %v166, %v128
    %v191 = vsel %vm185, %v169, %v130
    %v193 = vsel %vm185, %v172, %v132
    %v195 = vsel %vm185, %v175, %v134
    %v197 = vsel %vm185, %v178, %v136
    %v199 = vsel %vm185, %v181, %v138
    %v201 = vsel %vm185, %v184, %v140
    %vm202 = vcmask 392192
    %v204 = vsel %vm202, %v187, %v145
    %v206 = vsel %vm202, %v189, %v147
    %v208 = vsel %vm202, %v191, %v149
    %v210 = vsel %vm202, %v193, %v151
    %v212 = vsel %vm202, %v195, %v153
    %v214 = vsel %vm202, %v197, %v155
    %v216 = vsel %vm202, %v199, %v157
    %v218 = vsel %vm202, %v201, %v159
    %v219 = vld [vmem:[#allocation6] sm:$0xf]
    %v220 = vld [vmem:[#allocation6 + $0x4] sm:$0xf]
    %v221 = vld [vmem:[#allocation6 + $0x8] sm:$0xf]
    %v222 = vld [vmem:[#allocation6 + $0xc] sm:$0xf]
    %v223 = vld [vmem:[#allocation6 + $0x10] sm:$0xf]
    %v224 = vld [vmem:[#allocation6 + $0x14] sm:$0xf]
    %v225 = vld [vmem:[#allocation6 + $0x18] sm:$0xf]
    %v226 = vld [vmem:[#allocation6 + $0x1c] sm:$0xf]
    %v227 = vld [vmem:[%s2] sm:$0x1]
    %v229 = vlaneseq
    %v230 = vshrl.u32 %v229, 7
    %v231 = vsub.s32 0, %v230
    %v232 = vrot.slane %v227, %v231
    %v242 = vunpack.c.l.b16 %v204
    %v243 = vunpack.c.l.b16 %v206
    %v244 = vunpack.c.l.b16 %v208
    %v245 = vunpack.c.l.b16 %v210
    %v246 = vunpack.c.l.b16 %v212
    %v247 = vunpack.c.l.b16 %v214
    %v248 = vunpack.c.l.b16 %v216
    %v249 = vunpack.c.l.b16 %v218
    %v250 = vpack.c.b16 %v243, %v242
    %v251 = vpack.c.b16 %v245, %v244
    %v252 = vpack.c.b16 %v247, %v246
    %v253 = vpack.c.b16 %v249, %v248
    %v262 = vunpack.c.l.b16 %v219
    %v263 = vunpack.c.l.b16 %v220
    %v264 = vunpack.c.l.b16 %v221
    %v265 = vunpack.c.l.b16 %v222
    %v266 = vunpack.c.l.b16 %v223
    %v267 = vunpack.c.l.b16 %v224
    %v268 = vunpack.c.l.b16 %v225
    %v269 = vunpack.c.l.b16 %v226
    %v270 = vpack.c.b16 %v263, %v262
    %v271 = vpack.c.b16 %v265, %v264
    %v272 = vpack.c.b16 %v267, %v266
    %v273 = vpack.c.b16 %v269, %v268
    %vm278 = vcmask 523264
    %v280 = vsel %vm278, %v250, 0
    %v283 = vsel %vm278, %v251, 0
    %v286 = vsel %vm278, %v252, 0
    %v289 = vsel %vm278, %v253, 0
    %291 = vmatprep.subr.bf16.mxu0 0
    %292 = vmatpush1.bf16.msra.mxu0 0
    %293 = vmatprep.subr.bf16.mxu0 0
    %294 = vmatpush1.bf16.msra.mxu0 0
    %295 = vmatprep.subr.bf16.mxu0 0
    %296 = vmatpush1.bf16.msra.mxu0 0
    %297 = vmatprep.subr.bf16.mxu0 0
    %298 = vmatpush1.bf16.msra.mxu0 0
    %299 = vmatprep.subr.bf16.mxu0 0
    %300 = vmatpush1.bf16.msra.mxu0 %v273
    %301 = vmatprep.subr.bf16.mxu0 0
    %302 = vmatpush1.bf16.msra.mxu0 %v272
    %303 = vmatprep.subr.bf16.mxu0 0
    %304 = vmatpush1.bf16.msra.mxu0 %v271
    %305 = vmatprep.subr.bf16.mxu0 0
    %306 = vmatpush1.bf16.msra.mxu0 %v270
    %307 = vmatprep.subr.bf16.mxu0 0
    %308 = vmatpush2.bf16.msra.mxu0 0
    %309 = vmatprep.subr.bf16.mxu0 0
    %310 = vmatpush2.bf16.msra.mxu0 0
    %311 = vmatprep.subr.bf16.mxu0 0
    %312 = vmatpush2.bf16.msra.mxu0 0
    %313 = vmatprep.subr.bf16.mxu0 0
    %314 = vmatpush2.bf16.msra.mxu0 0
    %315 = vmatprep.subr.bf16.mxu0 0
    %316 = vmatpush2.bf16.msra.mxu0 0
    %317 = vmatprep.subr.bf16.mxu0 0
    %318 = vmatpush2.bf16.msra.mxu0 0
    %319 = vmatprep.subr.bf16.mxu0 0
    %320 = vmatpush2.bf16.msra.mxu0 0
    %321 = vmatprep.subr.bf16.mxu0 0
    %322 = vmatpush2.bf16.msra.mxu0 0
    %323 = vmatprep.mubr.bf16.mxu0 0
    %324 = vmatmul.mubr.bf16.gmra.mxu0 %v280
    %v325 = vpop.f32.mrf.mxu0
    %v326 = vadd.f32 %v232, %v325
    %v327 = vpop.f32.mrf.mxu0
    %v328 = vpop.f32.mrf.mxu0
    %v329 = vadd.f32 %v232, %v328
    %v330 = vpop.f32.mrf.mxu0
    %331 = vmatprep.mubr.bf16.mxu0 0
    %332 = vmatmul.mubr.bf16.gmra.mxu0 %v283
    %v333 = vpop.f32.mrf.mxu0
    %v334 = vadd.f32 %v232, %v333
    %v335 = vpop.f32.mrf.mxu0
    %v336 = vpop.f32.mrf.mxu0
    %v337 = vadd.f32 %v232, %v336
    %v338 = vpop.f32.mrf.mxu0
    %339 = vmatprep.mubr.bf16.mxu0 0
    %340 = vmatmul.mubr.bf16.gmra.mxu0 %v286
    %v341 = vpop.f32.mrf.mxu0
    %v342 = vadd.f32 %v232, %v341
    %v343 = vpop.f32.mrf.mxu0
    %v344 = vpop.f32.mrf.mxu0
    %v345 = vadd.f32 %v232, %v344
    %v346 = vpop.f32.mrf.mxu0
    %347 = vmatprep.mubr.bf16.mxu0 0
    %348 = vmatmul.mubr.bf16.gmra.mxu0 %v289
    %v349 = vpop.f32.mrf.mxu0
    %v350 = vadd.f32 %v232, %v349
    %v351 = vpop.f32.mrf.mxu0
    %v352 = vpop.f32.mrf.mxu0
    %v353 = vadd.f32 %v232, %v352
    %v354 = vpop.f32.mrf.mxu0
    %355 = vdwg.mxu0
    %s356 = smul.u32 0, 8
    %v357 = vlaneseq
    %v358 = vshrl.u32 %v357, 7
    %v359 = vstv %s356
    %v360 = vadd.s32 %v359, %v358
    %v361 = vld [vmem:[%s3] sm:$0x1]
    %v362 = vlaneseq
    %v363 = vshrl.u32 %v362, 7
    %v364 = vsub.s32 0, %v363
    %v365 = vrot.slane %v361, %v364
    %vm366 = vcmp.lt.s32.totalorder %v360, %v365
    %v367 = vsel %vm366, 1, 0
    %v368 = vcombine.high %v367, %v367
    %v370 = vunpack.c.l.s4 1966171168
    %v371 = vunpack.c.0.s8 %v370
    %v372 = vlaneseq
    %v373 = vshrl.u32 %v372, 7
    %v374 = vsub.s32 %v371, %v373
    %v375 = vrot.slane %v367, %v374
    %v377 = vunpack.c.l.s4 1966171168
    %v378 = vunpack.c.0.s8 %v377
    %v379 = vlaneseq
    %v380 = vshrl.u32 %v379, 7
    %v381 = vsub.s32 %v378, %v380
    %v382 = vrot.slane %v368, %v381
    %v383 = vcombine.high %v375, %v375
    %v384 = vcombine.high %v382, %v382
    %v386 = vunpack.c.l.s4 1966171168
    %v387 = vunpack.c.0.s8 %v386
    %v388 = vlaneseq
    %v389 = vshrl.u32 %v388, 7
    %v390 = vsub.s32 %v387, %v389
    %v391 = vrot.slane %v375, %v390
    %v393 = vunpack.c.l.s4 1966171168
    %v394 = vunpack.c.0.s8 %v393
    %v395 = vlaneseq
    %v396 = vshrl.u32 %v395, 7
    %v397 = vsub.s32 %v394, %v396
    %v398 = vrot.slane %v382, %v397
    %v400 = vunpack.c.l.s4 1966171168
    %v401 = vunpack.c.0.s8 %v400
    %v402 = vlaneseq
    %v403 = vshrl.u32 %v402, 7
    %v404 = vsub.s32 %v401, %v403
    %v405 = vrot.slane %v383, %v404
    %v407 = vunpack.c.l.s4 1966171168
    %v408 = vunpack.c.0.s8 %v407
    %v409 = vlaneseq
    %v410 = vshrl.u32 %v409, 7
    %v411 = vsub.s32 %v408, %v410
    %v412 = vrot.slane %v384, %v411
    %v413 = vcombine.high %v391, %v391
    %v414 = vcombine.high %v398, %v398
    %v415 = vcombine.high %v405, %v405
    %v416 = vcombine.high %v412, %v412
    %vm417 = vcmp.ne.s32.totalorder %v391, 0
    %vm418 = vcmp.ne.s32.totalorder %v405, 0
    %vm419 = vcmp.ne.s32.totalorder %v413, 0
    %vm420 = vcmp.ne.s32.totalorder %v415, 0
    %vm421 = vcmp.ne.s32.totalorder %v398, 0
    %vm422 = vcmp.ne.s32.totalorder %v412, 0
    %vm423 = vcmp.ne.s32.totalorder %v414, 0
    %vm424 = vcmp.ne.s32.totalorder %v416, 0
    %vm425 = vcmp.gt.f32.partialorder %v326, 0.0
    %vm426 = vcmp.gt.f32.partialorder %v329, 0.0
    %vm427 = vcmp.gt.f32.partialorder %v334, 0.0
    %vm428 = vcmp.gt.f32.partialorder %v337, 0.0
    %vm429 = vcmp.gt.f32.partialorder %v342, 0.0
    %vm430 = vcmp.gt.f32.partialorder %v345, 0.0
    %vm431 = vcmp.gt.f32.partialorder %v350, 0.0
    %vm432 = vcmp.gt.f32.partialorder %v353, 0.0
    %v433 = vsel %vm417, 1, 0
    %v434 = vsel %vm418, 1, 0
    %v435 = vsel %vm419, 1, 0
    %v436 = vsel %vm420, 1, 0
    %v437 = vsel %vm421, 1, 0
    %v438 = vsel %vm422, 1, 0
    %v439 = vsel %vm423, 1, 0
    %v440 = vsel %vm424, 1, 0
    %v441 = vlaneseq
    %v442 = vshrl.u32 %v441, 7
    %v443 = vsub.s32 0, %v442
    %v444 = vrot.slane %v433, %v443
    %v445 = vlaneseq
    %v446 = vshrl.u32 %v445, 7
    %v447 = vsub.s32 0, %v446
    %v448 = vrot.slane %v434, %v447
    %v449 = vlaneseq
    %v450 = vshrl.u32 %v449, 7
    %v451 = vsub.s32 0, %v450
    %v452 = vrot.slane %v435, %v451
    %v453 = vlaneseq
    %v454 = vshrl.u32 %v453, 7
    %v455 = vsub.s32 0, %v454
    %v456 = vrot.slane %v436, %v455
    %v457 = vlaneseq
    %v458 = vshrl.u32 %v457, 7
    %v459 = vsub.s32 0, %v458
    %v460 = vrot.slane %v437, %v459
    %v461 = vlaneseq
    %v462 = vshrl.u32 %v461, 7
    %v463 = vsub.s32 0, %v462
    %v464 = vrot.slane %v438, %v463
    %v465 = vlaneseq
    %v466 = vshrl.u32 %v465, 7
    %v467 = vsub.s32 0, %v466
    %v468 = vrot.slane %v439, %v467
    %v469 = vlaneseq
    %v470 = vshrl.u32 %v469, 7
    %v471 = vsub.s32 0, %v470
    %v472 = vrot.slane %v440, %v471
    %vm473 = vcmp.eq.s32.totalorder %v444, 1
    %vm474 = vcmp.eq.s32.totalorder %v448, 1
    %vm475 = vcmp.eq.s32.totalorder %v452, 1
    %vm476 = vcmp.eq.s32.totalorder %v456, 1
    %vm477 = vcmp.eq.s32.totalorder %v460, 1
    %vm478 = vcmp.eq.s32.totalorder %v464, 1
    %vm479 = vcmp.eq.s32.totalorder %v468, 1
    %vm480 = vcmp.eq.s32.totalorder %v472, 1
    %vm481 = vmand %vm473, %vm425
    %vm482 = vmand %vm474, %vm426
    %vm483 = vmand %vm475, %vm427
    %vm484 = vmand %vm476, %vm428
    %vm485 = vmand %vm477, %vm429
    %vm486 = vmand %vm478, %vm430
    %vm487 = vmand %vm479, %vm431
    %vm488 = vmand %vm480, %vm432
    %v489 = vsel %vm481, %v326, 0.0
    %v490 = vsel %vm482, %v329, 0.0
    %v491 = vsel %vm483, %v334, 0.0
    %v492 = vsel %vm484, %v337, 0.0
    %v493 = vsel %vm485, %v342, 0.0
    %v494 = vsel %vm486, %v345, 0.0
    %v495 = vsel %vm487, %v350, 0.0
    %v496 = vsel %vm488, %v353, 0.0
    %v497 = vld [vmem:[#allocation2] sm:$0xff]
    %v498 = vmax.f32 %v489, %v493
    %v499 = vmax.f32 %v490, %v494
    %v500 = vmax.f32 %v491, %v495
    %v501 = vmax.f32 %v492, %v496
    %v502 = vmax.f32 %v498, %v499
    %v503 = vmax.f32 %v500, %v501
    %v504 = vmax.f32 %v502, %v503
    %v505 = vmax.f32 %v497, %v504
    %506 = vst [vmem:[#allocation2] sm:$0xff] %v505
    // Predicated region
    $region42: #{tpu_custom_call.1} parent=1 // pred_check
      %p507 = pneg %p66
    $region43: #{tpu_custom_call.1} parent=1 // pred_check_branch
      %509 = sbr.rel (%p507) target = $region45
    $region44: #{tpu_custom_call.1} parent=1 // pred_region
      %v510 = vld [vmem:[#allocation2] sm:$0xff]
      %v511 = vpack.c.bf16 %v510, %v510
      %v512 = vld [vmem:[#allocation8] sm:$0xf]
      %v513 = vld [vmem:[#allocation8 + $0x4] sm:$0xf]
      %v514 = vld [vmem:[#allocation8 + $0x8] sm:$0xf]
      %v515 = vld [vmem:[#allocation8 + $0xc] sm:$0xf]
      %v516 = vld [vmem:[#allocation8 + $0x10] sm:$0xf]
      %v517 = vld [vmem:[#allocation8 + $0x14] sm:$0xf]
      %v518 = vld [vmem:[#allocation8 + $0x18] sm:$0xf]
      %v519 = vld [vmem:[#allocation8 + $0x1c] sm:$0xf]
      %v520 = vld [vmem:[#allocation8 + $0x20] sm:$0xf]
      %v521 = vld [vmem:[#allocation8 + $0x24] sm:$0xf]
      %v522 = vld [vmem:[#allocation8 + $0x28] sm:$0xf]
      %v523 = vld [vmem:[#allocation8 + $0x2c] sm:$0xf]
      %v524 = vld [vmem:[#allocation8 + $0x30] sm:$0xf]
      %v525 = vld [vmem:[#allocation8 + $0x34] sm:$0xf]
      %v526 = vld [vmem:[#allocation8 + $0x38] sm:$0xf]
      %v527 = vld [vmem:[#allocation8 + $0x3c] sm:$0xf]
      %v528 = vld [vmem:[%s5] sm:$0x1]
      %v530 = vlaneseq
      %v531 = vshrl.u32 %v530, 7
      %v532 = vsub.s32 0, %v531
      %v533 = vrot.slane %v528, %v532
      %v551 = vunpack.c.l.b16 %v512
      %v552 = vunpack.c.l.b16 %v513
      %v553 = vunpack.c.l.b16 %v514
      %v554 = vunpack.c.l.b16 %v515
      %v555 = vunpack.c.l.b16 %v516
      %v556 = vunpack.c.l.b16 %v517
      %v557 = vunpack.c.l.b16 %v518
      %v558 = vunpack.c.l.b16 %v519
      %v559 = vunpack.c.l.b16 %v520
      %v560 = vunpack.c.l.b16 %v521
      %v561 = vunpack.c.l.b16 %v522
      %v562 = vunpack.c.l.b16 %v523
      %v563 = vunpack.c.l.b16 %v524
      %v564 = vunpack.c.l.b16 %v525
      %v565 = vunpack.c.l.b16 %v526
      %v566 = vunpack.c.l.b16 %v527
      %v567 = vpack.c.b16 %v552, %v551
      %v568 = vpack.c.b16 %v554, %v553
      %v569 = vpack.c.b16 %v556, %v555
      %v570 = vpack.c.b16 %v558, %v557
      %v571 = vpack.c.b16 %v560, %v559
      %v572 = vpack.c.b16 %v562, %v561
      %v573 = vpack.c.b16 %v564, %v563
      %v574 = vpack.c.b16 %v566, %v565
      %583 = vmatprep.subr.bf16.mxu0 0
      %584 = vmatpush1.bf16.msra.mxu0 %v574
      %585 = vmatprep.subr.bf16.mxu0 0
      %586 = vmatpush1.bf16.msra.mxu0 %v573
      %587 = vmatprep.subr.bf16.mxu0 0
      %588 = vmatpush1.bf16.msra.mxu0 %v572
      %589 = vmatprep.subr.bf16.mxu0 0
      %590 = vmatpush1.bf16.msra.mxu0 %v571
      %591 = vmatprep.subr.bf16.mxu0 0
      %592 = vmatpush1.bf16.msra.mxu0 %v570
      %593 = vmatprep.subr.bf16.mxu0 0
      %594 = vmatpush1.bf16.msra.mxu0 %v569
      %595 = vmatprep.subr.bf16.mxu0 0
      %596 = vmatpush1.bf16.msra.mxu0 %v568
      %597 = vmatprep.subr.bf16.mxu0 0
      %598 = vmatpush1.bf16.msra.mxu0 %v567
      %599 = vmatprep.subr.bf16.mxu0 0
      %600 = vmatpush2.bf16.msra.mxu0 0
      %601 = vmatprep.subr.bf16.mxu0 0
      %602 = vmatpush2.bf16.msra.mxu0 0
      %603 = vmatprep.subr.bf16.mxu0 0
      %604 = vmatpush2.bf16.msra.mxu0 0
      %605 = vmatprep.subr.bf16.mxu0 0
      %606 = vmatpush2.bf16.msra.mxu0 0
      %607 = vmatprep.subr.bf16.mxu0 0
      %608 = vmatpush2.bf16.msra.mxu0 0
      %609 = vmatprep.subr.bf16.mxu0 0
      %610 = vmatpush2.bf16.msra.mxu0 0
      %611 = vmatprep.subr.bf16.mxu0 0
      %612 = vmatpush2.bf16.msra.mxu0 0
      %613 = vmatprep.subr.bf16.mxu0 0
      %614 = vmatpush2.bf16.msra.mxu0 0
      %615 = vmatprep.mubr.bf16.mxu0 0
      %616 = vmatmul.mubr.bf16.gmra.mxu0 %v511
      %v617 = vpop.f32.mrf.mxu0
      %v618 = vadd.f32 %v533, %v617
      %v619 = vpop.f32.mrf.mxu0
      %v620 = vpop.f32.mrf.mxu0
      %v621 = vpop.f32.mrf.mxu0
      %622 = vdwg.mxu0
      %623 = vst [vmem:[#allocation9] sm:$0xff] %v618
    $region45: #{tpu_custom_call.1} parent=1 // pred_fallthru
      _
    // Predicated region
    $region46: #{tpu_custom_call.1} parent=1 // pred_check
      _
    $region47: #{tpu_custom_call.1} parent=1 // pred_check_branch
      %625 = sbr.rel (0) target = $region49
    $region48: #{tpu_custom_call.1} parent=1 // pred_region
      %s627 = ssub.s32 128, 128
      %628 = vsyncadd [#allocation5], %s627
      %s630 = sshll.u32 [#allocation9], 4
      %s631 = int_to_ptr.vmem [resolvable:$true] %s630
      %633 = dma.vmem_to_hbm [thread:$0]  %s631, 128, %s6, [#allocation5]
    $region49: #{tpu_custom_call.1} parent=1 // pred_fallthru
      _
    // Predicated region
    $region50: #{tpu_custom_call.1} parent=1 // pred_check
      _
    $region51: #{tpu_custom_call.1} parent=1 // pred_check_branch
      %635 = sbr.rel (0) target = $region53
    $region52: #{tpu_custom_call.1} parent=1 // pred_region
      %636 = dma.done [#allocation5], 128
    $region53: #{tpu_custom_call.1} parent=1 // pred_fallthru
      _
    %637 = vsyncpa [#allocation4], 1
    %638 = vsyncpa [#allocation7], 1
    %639 = vsyncpa [#allocation5], 1

</llo_original>
